<compile_context>
chip_gen: v5e
topology: v5e:2x2
jax: 0.10.0
libtpu: 0.0.40
codegen_flags: <defaults>
</compile_context>

<pallas_src>
import math

import jax
import jax.numpy as jnp
from jax import lax
from jax.experimental import pallas as pl
from jax.experimental.pallas import tpu as pltpu  # noqa: F401  (TPU backend)

IN_FEATURES = 10
OUT_FEATURES = 10
BATCH = 1


def linear_kernel(x_ref, wt_ref, b_ref, o_ref):
    # x_ref : (1, 10)   activation
    # wt_ref: (10, 10)  weight pre-transposed to (in, out) -> clean NN matmul
    # b_ref : (1, 10)   bias
    # o_ref : (1, 10)   output
    # One MXU pass on sub-tile operands; Mosaic masks the logical K=10
    # contraction (tile padding contributes nothing).
    acc = lax.dot_general(
        x_ref[...], wt_ref[...],
        dimension_numbers=(((1,), (0,)), ((), ())),
        preferred_element_type=jnp.float32,
    )
    o_ref[...] = acc + b_ref[...]


def linear_pallas(x, weight, bias):
    """y = x @ weight.T + bias (nn.Linear semantics) via a single Pallas MXU pass.

    No wrapper-side padding: the natural-shaped arrays are DMA'd directly
    into VMEM (full-array BlockSpecs, no grid).
    """
    wt = weight.T                          # (in, out); tiny, fused under jit
    b2 = bias.reshape(1, OUT_FEATURES)     # 2-D bias for a clean VMEM layout

    return pl.pallas_call(
        linear_kernel,
        out_shape=jax.ShapeDtypeStruct((BATCH, OUT_FEATURES), jnp.float32),
        in_specs=[
            pl.BlockSpec((BATCH, IN_FEATURES), lambda: (0, 0)),
            pl.BlockSpec((IN_FEATURES, OUT_FEATURES), lambda: (0, 0)),
            pl.BlockSpec((1, OUT_FEATURES), lambda: (0, 0)),
        ],
        out_specs=pl.BlockSpec((BATCH, OUT_FEATURES), lambda: (0, 0)),
    )(x, wt, b2)


@jax.jit
def model_with_module_dict_forward(key):
    """Reproduces ModelWithModuleDict.forward(): module['foo'] (Linear(10,10))
    applied to a uniform random (1, 10) input.

    The module's unused `other_layer` is never applied in forward(), so its
    parameter RNG is skipped (dead values, pure overhead).
    Returns (y, x, weight, bias) so a one-off reference check can run outside
    the jitted hot path.
    """
    k_w, k_b, k_x = jax.random.split(key, 3)

    # PyTorch-style uniform(-1/sqrt(fan_in), +1/sqrt(fan_in)) init (deterministic).
    bound = 1.0 / math.sqrt(IN_FEATURES)
    foo_weight = jax.random.uniform(
        k_w, (OUT_FEATURES, IN_FEATURES), jnp.float32, -bound, bound)
    foo_bias = jax.random.uniform(
        k_b, (OUT_FEATURES,), jnp.float32, -bound, bound)

    # torch.rand(1, 10) -> uniform [0, 1), made deterministic here.
    # TODO(synk): does not reproduce torch's RNG stream bitwise (different PRNG).
    x = jax.random.uniform(k_x, (BATCH, IN_FEATURES), jnp.float32, 0.0, 1.0)

    y = linear_pallas(x, foo_weight, foo_bias)
    return y, x, foo_weight, foo_bias


if __name__ == "__main__":
    key = jax.random.PRNGKey(0)
    y, x, w, b = model_with_module_dict_forward(key)
    jax.block_until_ready(y)

    assert y.shape == (BATCH, OUT_FEATURES) and y.dtype == jnp.float32

    # One-off correctness check (outside the jitted hot path / not per-call).
    # Also verifies Mosaic masks the logical K=10 contraction correctly.
    y_ref = x @ w.T + b
    assert jnp.allclose(y, y_ref, atol=1e-5, rtol=1e-5)

    print("KERNEL_OK")
</pallas_src>

<mosaic_0001>
module attributes {stable_mosaic.version = 11 : i64} {
  func.func @linear_kernel(%arg0: memref<1x10xf32, #tpu.memory_space<vmem>>, %arg1: memref<10x10xf32, #tpu.memory_space<vmem>>, %arg2: memref<1x10xf32, #tpu.memory_space<vmem>>, %arg3: memref<1x10xf32, #tpu.memory_space<vmem>>) attributes {dimension_semantics = [], scalar_prefetch = 0 : i64, scratch_operands = 0 : i64, tpu.core_type = #tpu.core_type<tc>} {
    %c0 = arith.constant 0 : index
    %c0_0 = arith.constant 0 : index
    %0 = vector.load %arg0[%c0, %c0_0] : memref<1x10xf32, #tpu.memory_space<vmem>>, vector<1x10xf32>
    %c0_1 = arith.constant 0 : index
    %c0_2 = arith.constant 0 : index
    %1 = vector.load %arg1[%c0_1, %c0_2] : memref<10x10xf32, #tpu.memory_space<vmem>>, vector<10x10xf32>
    %cst = arith.constant dense<0.000000e+00> : vector<1x10xf32>
    %2 = tpu.matmul %0, %1, %cst {dimension_numbers = #tpu.dot_dimension_numbers<[1], [0], [0], [1], [0, 0, 1, 1], [], []>} : vector<1x10xf32>, vector<10x10xf32>, vector<1x10xf32> -> vector<1x10xf32>
    %c0_3 = arith.constant 0 : index
    %c0_4 = arith.constant 0 : index
    %3 = vector.load %arg2[%c0_3, %c0_4] : memref<1x10xf32, #tpu.memory_space<vmem>>, vector<1x10xf32>
    %4 = arith.addf %2, %3 : vector<1x10xf32>
    %c0_5 = arith.constant 0 : index
    %c0_6 = arith.constant 0 : index
    %5 = vector.load %arg3[%c0_5, %c0_6] : memref<1x10xf32, #tpu.memory_space<vmem>>, vector<1x10xf32>
    tpu.vector_store %arg3[%c0_5, %c0_6], %4 {strides = array<i32>} : memref<1x10xf32, #tpu.memory_space<vmem>>, vector<1x10xf32>,
    return
  }
}

</mosaic_0001>

<llo_original>
// kernel: model_with_module_dict_forward.3
$region0: #{model_with_module_dict_forward.3}
  #allocation0 [shape = 'u32[]', space=smem, size = 0x4, offset = 0x4, fixed_abs, tag = 'smem constant byte address 0x4 - core index']
  #allocation1 [shape = 'u32[72,128]{1,0:T(1,128)}', space=vmem, size = 0x9000, scoped, tag = 'internal scratch']
  %s0 = inlined_call_operand.vmem [shape: f32[1,10], index: 0, kind: input, shape index: {}]
  %s1 = inlined_call_operand.vmem [shape: f32[10,10], index: 1, kind: input, shape index: {}]
  %s2 = inlined_call_operand.vmem [shape: f32[1,10], index: 2, kind: input, shape index: {}]
  %s3 = inlined_call_operand.hbm [shape: f32[1,10], index: 3, kind: output, shape index: {}]
  %s4 = sld [smem:[#allocation0]]
  $region22: #{model_with_module_dict_forward.3} parent=0
    _
  %s6 = ssub.s32 1, %s4
  %s7 = scalar_select 0, %s6, %s4
  $region1: #{model_with_module_dict_forward.3} parent=0
    #allocation2 [shape = 'u8[512]{0}', space=vmem, size = 0x400, scoped, tag = 'output window, operand 0, single buffered']
    #allocation3 [shape = 's32[1]{0}', space=sflag, size = 0x4, scoped, tag = 'scoped memory for model_with_module_dict_forward.3']
    %8 = vsyncpa [#allocation3], 0
    // Predicated region
    $region2: #{model_with_module_dict_forward.3} parent=1 // pred_check
      _
    $region3: #{model_with_module_dict_forward.3} parent=1 // pred_check_branch
      %10 = sbr.rel (0) target = $region5
    $region4: #{model_with_module_dict_forward.3} parent=1 // pred_region
      _
    $region5: #{model_with_module_dict_forward.3} parent=1 // pred_fallthru
      _
    // Predicated region
    $region6: #{model_with_module_dict_forward.3} parent=1 // pred_check
      _
    $region7: #{model_with_module_dict_forward.3} parent=1 // pred_check_branch
      %12 = sbr.rel (0) target = $region9
    $region8: #{model_with_module_dict_forward.3} parent=1 // pred_region
      _
    $region9: #{model_with_module_dict_forward.3} parent=1 // pred_fallthru
      _
    // Predicated region
    $region10: #{model_with_module_dict_forward.3} parent=1 // pred_check
      _
    $region11: #{model_with_module_dict_forward.3} parent=1 // pred_check_branch
      %14 = sbr.rel (0) target = $region13
    $region12: #{model_with_module_dict_forward.3} parent=1 // pred_region
      _
    $region13: #{model_with_module_dict_forward.3} parent=1 // pred_fallthru
      _
    %v15 = vld [vmem:[%s0] sm:$0x1]
    %v16 = vld [vmem:[%s1] sm:$0xff]
    %v17 = vld [vmem:[%s1 + $0x8] sm:$0x3]
    %v18 = vld [vmem:[%s2] sm:$0x1]
    %vm19 = vcmask 80896
    %v21 = vsel %vm19, %v15, 0
    %vm23 = vcmask 1041408
    %v25 = vsel %vm23, %v17, 0
    %27 = vmatpush.msra.mxu0 0.0
    %28 = vmatpush.msra.mxu0 0.0
    %29 = vmatpush.msra.mxu0 0.0
    %30 = vmatpush.msra.mxu0 0.0
    %31 = vmatpush.msra.mxu0 0.0
    %32 = vmatpush.msra.mxu0 0.0
    %33 = vmatpush.msra.mxu0 0.0
    %34 = vmatpush.msra.mxu0 0.0
    %35 = vmatpush.msra.mxu0 0.0
    %36 = vmatpush.msra.mxu0 0.0
    %37 = vmatpush.msra.mxu0 0.0
    %38 = vmatpush.msra.mxu0 0.0
    %39 = vmatpush.msra.mxu0 0.0
    %40 = vmatpush.msra.mxu0 0.0
    %41 = vmatpush.msra.mxu0 %v25
    %42 = vmatpush.msra.mxu0 %v16
    %43 = vmatmul.f32.gmra.mxu0 %v21
    %v44 = vpop.f32.mrf.mxu0
    %v45 = vadd.f32 %v18, %v44
    %46 = vdwg.mxu0
    %vm47 = vcmask 73728
    %48 = vst.msk [vmem:[#allocation2] sm:$0x1] %vm47, %v45
    // Predicated region
    $region14: #{model_with_module_dict_forward.3} parent=1 // pred_check
      _
    $region15: #{model_with_module_dict_forward.3} parent=1 // pred_check_branch
      %50 = sbr.rel (0) target = $region17
    $region16: #{model_with_module_dict_forward.3} parent=1 // pred_region
      %52 = vsyncadd [#allocation3], 0
      %s54 = sshll.u32 [#allocation2], 4
      %s55 = int_to_ptr.vmem [resolvable:$true] %s54
      %s56 = sshll.u32 %s3, 4
      %s57 = int_to_ptr.hbm [resolvable:$true] %s56
      %59 = dma.vmem_to_hbm [thread:$0]  %s55, 16, %s57, [#allocation3]
    $region17: #{model_with_module_dict_forward.3} parent=1 // pred_fallthru
      _
    // Predicated region
    $region18: #{model_with_module_dict_forward.3} parent=1 // pred_check
      _
    $region19: #{model_with_module_dict_forward.3} parent=1 // pred_check_branch
      %61 = sbr.rel (0) target = $region21
    $region20: #{model_with_module_dict_forward.3} parent=1 // pred_region
      %63 = dma.done [#allocation3], 16
    $region21: #{model_with_module_dict_forward.3} parent=1 // pred_fallthru
      _
    %64 = vsyncpa [#allocation3], 1

</llo_original>
